<compile_context>
chip_gen: v6e
topology: v6e:2x2x1
jax: 0.10.0
libtpu: 0.0.40
codegen_flags: <defaults>
</compile_context>

<pallas_src>
import functools

import numpy as np

import jax
import jax.numpy as jnp
from jax.experimental import pallas as pl
from jax.experimental.pallas import tpu as pltpu

LN_EPS = 1e-5
LANE = 128

_W_KEYS_FWD = ("wt1", "bt1", "wt2", "bt2",
               "w1", "b1", "g1", "be1",
               "w2", "b2", "g2", "be2",
               "w3", "b3")

_VMEM = pl.BlockSpec(memory_space=pltpu.MemorySpace.VMEM)
_SMEM = pl.BlockSpec(memory_space=pltpu.MemorySpace.SMEM)


# ----------------------------------------------------------------------------
# small helpers
# ----------------------------------------------------------------------------
def _round_up(n, m):
    return ((n + m - 1) // m) * m


def _pad_last(a, target):
    pad = target - a.shape[-1]
    if pad == 0:
        return a
    return jnp.pad(a, [(0, 0)] * (a.ndim - 1) + [(0, pad)])


def _pad_2d(a, rows, cols):
    return jnp.pad(a, ((0, rows - a.shape[0]), (0, cols - a.shape[1])))


def _silu(x, approx=False):
    if approx:
        # divide goes to the EUP slot instead of the VALU
        return x * pl.reciprocal(1.0 + jnp.exp(-x), approx=True)
    return x * jax.nn.sigmoid(x)


def _layernorm(x, gamma, beta, valid_dim):
    """One-pass LayerNorm over the first `valid_dim` lanes.

    Requires: padded lanes of x, gamma and beta are exactly zero (guaranteed
    by _pad_params / the padded matmul chain).  Then both lane-sums only see
    the valid lanes and the padded output lanes stay exactly zero because
    gamma/beta are zero there.
    """
    inv_n = 1.0 / float(valid_dim)
    mean = jnp.sum(x, axis=-1, keepdims=True) * inv_n
    msq = jnp.sum(x * x, axis=-1, keepdims=True) * inv_n
    var = msq - mean * mean
    inv = jax.lax.rsqrt(var + LN_EPS)
    return (x - mean) * inv * gamma + beta


# ----------------------------------------------------------------------------
# kernels
# ----------------------------------------------------------------------------
def _fwd_kernel(x_ref, t_ref,
                wt1, bt1, wt2, bt2,
                w1, b1, g1, be1,
                w2, b2, g2, be2,
                w3, b3,
                out_ref, *, hidden_dim):
    """One DiffusionModel.forward on lane-padded tensors (f32)."""
    x = x_ref[...]                                   # [B, Fp]
    t = t_ref[...]                                   # [B, 1]

    # time embedding: Linear(1->H) is a rank-1 outer product -> VPU, not MXU.
    h_t = _silu(t * wt1[...] + bt1[...])                                   # [B, Hp]
    t_emb = jnp.dot(h_t, wt2[...], preferred_element_type=jnp.float32) + bt2[...]

    m = x + t_emb
    h = jnp.dot(m, w1[...], preferred_element_type=jnp.float32) + b1[...]
    h = _silu(_layernorm(h, g1[...], be1[...], hidden_dim))
    h = jnp.dot(h, w2[...], preferred_element_type=jnp.float32) + b2[...]
    h = _silu(_layernorm(h, g2[...], be2[...], hidden_dim))
    out = jnp.dot(h, w3[...], preferred_element_type=jnp.float32) + b3[...]
    out_ref[...] = out.astype(out_ref.dtype)


def _sample_kernel(ic2_ref, c1ic2_ref, sv_ref,       # SMEM [num_steps] each
                   x0_ref, noise_ref, b1t_ref,       # VMEM
                   w1, g1, be1, w2, b2, g2, be2, w3, b3,
                   out_ref, *, hidden_dim, num_steps, unroll):
    """Full reverse-diffusion loop; weights stay VMEM-resident.

    Weight refs are read at the point of use inside the body (NOT hoisted
    above the loop) to avoid pinning ~64 vregs of weights and spilling.
    """
    mm = w1.dtype   # matmul operand dtype (f32 or bf16); accumulation is f32

    def body(k, x):
        i = num_steps - 1 - k                        # i = num_steps-1, ..., 1
        # hoisted time path: b1_t[i] = time_embed(t_i) @ w1 + b1
        b1t = b1t_ref[i]                             # [1, Hp]
        h = jnp.dot(x.astype(mm), w1[...],
                    preferred_element_type=jnp.float32) + b1t
        h = _silu(_layernorm(h, g1[...], be1[...], hidden_dim), approx=True)
        h = jnp.dot(h.astype(mm), w2[...],
                    preferred_element_type=jnp.float32) + b2[...]
        h = _silu(_layernorm(h, g2[...], be2[...], hidden_dim), approx=True)
        pred = jnp.dot(h.astype(mm), w3[...],
                       preferred_element_type=jnp.float32) + b3[...]
        # x_{i-1} = x/c2 - (c1/c2)*pred + sqrt(var)*noise   (sv[1] == 0)
        return x * ic2_ref[i] - c1ic2_ref[i] * pred + sv_ref[i] * noise_ref[i]

    x_final = jax.lax.fori_loop(0, num_steps - 1, body, x0_ref[...],
                                unroll=unroll)
    out_ref[...] = x_final.astype(out_ref.dtype)


# ----------------------------------------------------------------------------
# wrappers
# ----------------------------------------------------------------------------
def _pad_params(p, feature_dim, hidden_dim):
    """Zero-pad every parameter to 128-lane multiples.

    Invariant relied on by the kernels: all padded columns / biases / gammas /
    betas are exactly zero, so padded activation lanes stay zero end-to-end.
    """
    Fp = _round_up(feature_dim, LANE)
    Hp = _round_up(hidden_dim, LANE)
    return {
        "wt1": _pad_2d(p["wt1"], 1, Hp),
        "bt1": _pad_2d(p["bt1"], 1, Hp),
        "wt2": _pad_2d(p["wt2"], Hp, Fp),
        "bt2": _pad_2d(p["bt2"], 1, Fp),
        "w1":  _pad_2d(p["w1"], Fp, Hp),
        "b1":  _pad_2d(p["b1"], 1, Hp),
        "g1":  _pad_2d(p["g1"], 1, Hp),
        "be1": _pad_2d(p["be1"], 1, Hp),
        "w2":  _pad_2d(p["w2"], Hp, Hp),
        "b2":  _pad_2d(p["b2"], 1, Hp),
        "g2":  _pad_2d(p["g2"], 1, Hp),
        "be2": _pad_2d(p["be2"], 1, Hp),
        "w3":  _pad_2d(p["w3"], Hp, Fp),
        "b3":  _pad_2d(p["b3"], 1, Fp),
    }


def diffusion_forward(x, t, params, hidden_dim):
    """Fused DiffusionModel.forward.  x: [B, F], t: [B] -> [B, F]."""
    B, F = x.shape
    Fp = _round_up(F, LANE)
    xp = _pad_last(x.astype(jnp.float32), Fp)
    t2d = t.reshape(B, 1).astype(jnp.float32)
    pp = _pad_params(params, F, hidden_dim)
    w = tuple(pp[k] for k in _W_KEYS_FWD)

    out = pl.pallas_call(
        functools.partial(_fwd_kernel, hidden_dim=hidden_dim),
        out_shape=jax.ShapeDtypeStruct((B, Fp), jnp.float32),
        in_specs=[_VMEM] * (2 + len(w)),
        out_specs=_VMEM,
    )(xp, t2d, *w)
    return out[:, :F]


def _make_schedule(num_steps):
    """Per-step coefficients (index 0 unused).

    The beta/alpha/cumprod schedule is computed in f32 (matching the module);
    the reciprocal / ratio folding is done in f64 so the precomputed
    ic2 = 1/c2 and c1/c2 do not add drift over the 49 serial steps.
    """
    betas32 = np.linspace(1e-4, 0.02, num_steps, dtype=np.float32)
    alphas32 = (1.0 - betas32).astype(np.float32)
    acp32 = np.cumprod(alphas32, dtype=np.float32)

    betas = betas32.astype(np.float64)
    alphas = alphas32.astype(np.float64)
    acp = acp32.astype(np.float64)
    acp_prev = np.concatenate([np.ones(1, np.float64), acp[:-1]])

    variance = betas * (1.0 - acp_prev) / (1.0 - acp)
    c1 = np.sqrt(acp_prev) * betas / (1.0 - acp)
    c2 = np.sqrt(alphas) * (1.0 - acp_prev) / (1.0 - acp)
    c2 = np.where(c2 == 0.0, 1.0, c2)                 # only index 0 is zero / unused

    ic2 = (1.0 / c2).astype(np.float32)
    c1ic2 = (c1 / c2).astype(np.float32)
    sv = np.sqrt(variance)
    sv[:2] = 0.0                                       # final step (i == 1): mean only
    sv = sv.astype(np.float32)
    t_vals = (np.arange(num_steps, dtype=np.float64) / num_steps).astype(np.float32)
    return t_vals, ic2, c1ic2, sv


def _time_bias_table(params, t_vals):
    """b1_t[i] = time_embed(t_i) @ w1 + b1  -- tiny one-off XLA matmuls."""
    t = jnp.asarray(t_vals)[:, None]                                  # [S, 1]
    h = t @ params["wt1"] + params["bt1"]
    h = h * jax.nn.sigmoid(h)
    t_emb = h @ params["wt2"] + params["bt2"]                         # [S, F]
    return t_emb @ params["w1"] + params["b1"]                        # [S, H]


def diffusion_sample(x0, noise, params, hidden_dim, num_steps,
                     matmul_dtype=jnp.float32, unroll=2):
    """Full reverse-diffusion sampling fused into ONE pallas_call.

    x0:    [B, F]             initial Gaussian noise
    noise: [num_steps, B, F]  pre-generated per-step Gaussian noise
    matmul_dtype: jnp.float32 (exact) or jnp.bfloat16 (v6e/v7x MXU-friendly;
                  accumulation stays f32, LayerNorm/schedule math stays f32).
    """
    B, F = x0.shape
    Fp = _round_up(F, LANE)
    Hp = _round_up(hidden_dim, LANE)
    x0p = _pad_last(x0.astype(jnp.float32), Fp)
    noisep = _pad_last(noise.astype(jnp.float32), Fp)

    pp = _pad_params(params, F, hidden_dim)
    t_vals, ic2, c1ic2, sv = _make_schedule(num_steps)

    # hoisted, x-independent time path (padded lanes are zero)
    b1t = _pad_last(_time_bias_table(params, t_vals), Hp)[:, None, :]  # [S, 1, Hp]

    mm = matmul_dtype
    w = (pp["w1"].astype(mm), pp["g1"], pp["be1"],
         pp["w2"].astype(mm), pp["b2"], pp["g2"], pp["be2"],
         pp["w3"].astype(mm), pp["b3"])

    out = pl.pallas_call(
        functools.partial(_sample_kernel, hidden_dim=hidden_dim,
                          num_steps=num_steps, unroll=unroll),
        out_shape=jax.ShapeDtypeStruct((B, Fp), jnp.float32),
        in_specs=[_SMEM] * 3 + [_VMEM] * (3 + len(w)),
        out_specs=_VMEM,
    )(jnp.asarray(ic2), jnp.asarray(c1ic2), jnp.asarray(sv),
      x0p, noisep, b1t, *w)
    return out[:, :F]


# ----------------------------------------------------------------------------
# parameters + pure-JAX references
# ----------------------------------------------------------------------------
def init_params(key, feature_dim, hidden_dim):
    """Deterministic synthetic parameters (PyTorch Linear weight is [out,in];
    we store the transpose [in,out])."""
    ks = jax.random.split(key, 8)
    s = 0.05
    return {
        # time_embed: Linear(1,H) -> SiLU -> Linear(H,F)
        "wt1": s * jax.random.normal(ks[0], (1, hidden_dim), jnp.float32),
        "bt1": jnp.zeros((1, hidden_dim), jnp.float32),
        "wt2": s * jax.random.normal(ks[1], (hidden_dim, feature_dim), jnp.float32),
        "bt2": jnp.zeros((1, feature_dim), jnp.float32),
        # noise_predictor
        "w1": s * jax.random.normal(ks[2], (feature_dim, hidden_dim), jnp.float32),
        "b1": jnp.zeros((1, hidden_dim), jnp.float32),
        "g1": jnp.ones((1, hidden_dim), jnp.float32),
        "be1": jnp.zeros((1, hidden_dim), jnp.float32),
        "w2": s * jax.random.normal(ks[3], (hidden_dim, hidden_dim), jnp.float32),
        "b2": jnp.zeros((1, hidden_dim), jnp.float32),
        "g2": jnp.ones((1, hidden_dim), jnp.float32),
        "be2": jnp.zeros((1, hidden_dim), jnp.float32),
        "w3": s * jax.random.normal(ks[4], (hidden_dim, feature_dim), jnp.float32),
        "b3": jnp.zeros((1, feature_dim), jnp.float32),
    }


def reference_forward(x, t, p):
    """Pure-JAX reference mirroring the PyTorch module's forward()."""
    def silu(v):
        return v * jax.nn.sigmoid(v)

    def ln(v, g, b):
        mu = jnp.mean(v, -1, keepdims=True)
        var = jnp.mean((v - mu) ** 2, -1, keepdims=True)
        return (v - mu) / jnp.sqrt(var + LN_EPS) * g + b

    t2d = t.reshape(-1, 1)
    t_emb = silu(t2d @ p["wt1"] + p["bt1"]) @ p["wt2"] + p["bt2"]
    m = x + t_emb
    h = silu(ln(m @ p["w1"] + p["b1"], p["g1"], p["be1"]))
    h = silu(ln(h @ p["w2"] + p["b2"], p["g2"], p["be2"]))
    return h @ p["w3"] + p["b3"]


def reference_sample(x0, noise, p, num_steps):
    """Pure-JAX reference mirroring the PyTorch module's sample() loop
    (with the per-step Gaussian noise passed in for determinism)."""
    betas = jnp.linspace(1e-4, 0.02, num_steps).astype(jnp.float32)
    alphas = 1.0 - betas
    acp = jnp.cumprod(alphas)
    x = x0
    B = x0.shape[0]
    for i in range(num_steps - 1, 0, -1):
        t = jnp.full((B,), i / num_steps, jnp.float32)
        pred = reference_forward(x, t, p)
        beta = betas[i]
        a_c, a_c_prev = acp[i], acp[i - 1]
        variance = beta * (1.0 - a_c_prev) / (1.0 - a_c)
        c1 = jnp.sqrt(a_c_prev) * beta / (1.0 - a_c)
        c2 = jnp.sqrt(alphas[i]) * (1.0 - a_c_prev) / (1.0 - a_c)
        mean = (x - c1 * pred) / c2
        if i > 1:
            x = mean + jnp.sqrt(variance) * noise[i]
        else:
            x = mean
    return x


# ----------------------------------------------------------------------------
if __name__ == "__main__":
    B, FEAT, HID, NUM_STEPS = 8, 32, 64, 50
    key = jax.random.PRNGKey(0)
    kx, kt, kx0, kn, kp = jax.random.split(key, 5)

    params = init_params(kp, FEAT, HID)

    # ---- single forward pass (the module's forward()) ----
    x = jax.random.normal(kx, (B, FEAT), jnp.float32)
    t = jax.random.randint(kt, (B,), 1, NUM_STEPS).astype(jnp.float32) / NUM_STEPS
    out = jax.block_until_ready(diffusion_forward(x, t, params, HID))
    ref = reference_forward(x, t, params)
    assert out.shape == (B, FEAT)
    assert jnp.allclose(out, ref, atol=5e-4, rtol=5e-4), "forward mismatch"

    # ---- fused 49-step sampling loop: one kernel launch total (f32 MXU) ----
    x0 = jax.random.normal(kx0, (B, FEAT), jnp.float32)
    noise = jax.random.normal(kn, (NUM_STEPS, B, FEAT), jnp.float32)
    samp = jax.block_until_ready(diffusion_sample(x0, noise, params, HID, NUM_STEPS))
    ref_s = reference_sample(x0, noise, params, NUM_STEPS)
    assert samp.shape == (B, FEAT)
    rel = float(jnp.max(jnp.abs(samp - ref_s)) /
                (jnp.max(jnp.abs(ref_s)) + 1e-6))
    assert rel < 5e-3, f"fused sampler mismatch (rel err {rel:.2e})"

    # ---- bf16 matmul-operand path (v6e/v7x MXU-friendly), looser tolerance --
    samp_bf16 = jax.block_until_ready(
        diffusion_sample(x0, noise, params, HID, NUM_STEPS,
                         matmul_dtype=jnp.bfloat16))
    rel_bf = float(jnp.max(jnp.abs(samp_bf16 - ref_s)) /
                   (jnp.max(jnp.abs(ref_s)) + 1e-6))
    assert jnp.all(jnp.isfinite(samp_bf16))
    assert rel_bf < 2e-2, f"bf16 sampler mismatch (rel err {rel_bf:.2e})"

    print("KERNEL_OK")
</pallas_src>

<mosaic_0001>
module attributes {stable_mosaic.version = 11 : i64} {
  func.func @_fwd_kernel(%arg0: memref<8x128xf32, #tpu.memory_space<vmem>>, %arg1: memref<8x1xf32, #tpu.memory_space<vmem>>, %arg2: memref<1x128xf32, #tpu.memory_space<vmem>>, %arg3: memref<1x128xf32, #tpu.memory_space<vmem>>, %arg4: memref<128x128xf32, #tpu.memory_space<vmem>>, %arg5: memref<1x128xf32, #tpu.memory_space<vmem>>, %arg6: memref<128x128xf32, #tpu.memory_space<vmem>>, %arg7: memref<1x128xf32, #tpu.memory_space<vmem>>, %arg8: memref<1x128xf32, #tpu.memory_space<vmem>>, %arg9: memref<1x128xf32, #tpu.memory_space<vmem>>, %arg10: memref<128x128xf32, #tpu.memory_space<vmem>>, %arg11: memref<1x128xf32, #tpu.memory_space<vmem>>, %arg12: memref<1x128xf32, #tpu.memory_space<vmem>>, %arg13: memref<1x128xf32, #tpu.memory_space<vmem>>, %arg14: memref<128x128xf32, #tpu.memory_space<vmem>>, %arg15: memref<1x128xf32, #tpu.memory_space<vmem>>, %arg16: memref<8x128xf32, #tpu.memory_space<vmem>>) attributes {dimension_semantics = [], scalar_prefetch = 0 : i64, scratch_operands = 0 : i64, tpu.core_type = #tpu.core_type<tc>} {
    %c0 = arith.constant 0 : index
    %c0_0 = arith.constant 0 : index
    %0 = vector.load %arg0[%c0, %c0_0] : memref<8x128xf32, #tpu.memory_space<vmem>>, vector<8x128xf32>
    %c0_1 = arith.constant 0 : index
    %c0_2 = arith.constant 0 : index
    %1 = vector.load %arg1[%c0_1, %c0_2] : memref<8x1xf32, #tpu.memory_space<vmem>>, vector<8x1xf32>
    %c0_3 = arith.constant 0 : index
    %c0_4 = arith.constant 0 : index
    %2 = vector.load %arg2[%c0_3, %c0_4] : memref<1x128xf32, #tpu.memory_space<vmem>>, vector<1x128xf32>
    %3 = vector.broadcast %1 : vector<8x1xf32> to vector<8x128xf32>
    %4 = vector.broadcast %2 : vector<1x128xf32> to vector<8x128xf32>
    %5 = arith.mulf %3, %4 : vector<8x128xf32>
    %c0_5 = arith.constant 0 : index
    %c0_6 = arith.constant 0 : index
    %6 = vector.load %arg3[%c0_5, %c0_6] : memref<1x128xf32, #tpu.memory_space<vmem>>, vector<1x128xf32>
    %7 = vector.broadcast %6 : vector<1x128xf32> to vector<8x128xf32>
    %8 = arith.addf %5, %7 : vector<8x128xf32>
    %9 = arith.negf %8 : vector<8x128xf32>
    %10 = math.exp %9 : vector<8x128xf32>
    %cst = arith.constant 1.000000e+00 : f32
    %11 = vector.broadcast %cst : f32 to vector<8x128xf32>
    %12 = arith.addf %11, %10 : vector<8x128xf32>
    %13 = arith.divf %11, %12 : vector<8x128xf32>
    %14 = arith.mulf %8, %13 : vector<8x128xf32>
    %c0_7 = arith.constant 0 : index
    %c0_8 = arith.constant 0 : index
    %15 = vector.load %arg4[%c0_7, %c0_8] : memref<128x128xf32, #tpu.memory_space<vmem>>, vector<128x128xf32>
    %cst_9 = arith.constant dense<0.000000e+00> : vector<8x128xf32>
    %16 = tpu.matmul %14, %15, %cst_9 {dimension_numbers = #tpu.dot_dimension_numbers<[1], [0], [0], [1], [0, 0, 1, 1], [], []>} : vector<8x128xf32>, vector<128x128xf32>, vector<8x128xf32> -> vector<8x128xf32>
    %c0_10 = arith.constant 0 : index
    %c0_11 = arith.constant 0 : index
    %17 = vector.load %arg5[%c0_10, %c0_11] : memref<1x128xf32, #tpu.memory_space<vmem>>, vector<1x128xf32>
    %18 = vector.broadcast %17 : vector<1x128xf32> to vector<8x128xf32>
    %19 = arith.addf %16, %18 : vector<8x128xf32>
    %20 = arith.addf %0, %19 : vector<8x128xf32>
    %c0_12 = arith.constant 0 : index
    %c0_13 = arith.constant 0 : index
    %21 = vector.load %arg6[%c0_12, %c0_13] : memref<128x128xf32, #tpu.memory_space<vmem>>, vector<128x128xf32>
    %cst_14 = arith.constant dense<0.000000e+00> : vector<8x128xf32>
    %22 = tpu.matmul %20, %21, %cst_14 {dimension_numbers = #tpu.dot_dimension_numbers<[1], [0], [0], [1], [0, 0, 1, 1], [], []>} : vector<8x128xf32>, vector<128x128xf32>, vector<8x128xf32> -> vector<8x128xf32>
    %c0_15 = arith.constant 0 : index
    %c0_16 = arith.constant 0 : index
    %23 = vector.load %arg7[%c0_15, %c0_16] : memref<1x128xf32, #tpu.memory_space<vmem>>, vector<1x128xf32>
    %24 = vector.broadcast %23 : vector<1x128xf32> to vector<8x128xf32>
    %25 = arith.addf %22, %24 : vector<8x128xf32>
    %c0_17 = arith.constant 0 : index
    %c0_18 = arith.constant 0 : index
    %26 = vector.load %arg8[%c0_17, %c0_18] : memref<1x128xf32, #tpu.memory_space<vmem>>, vector<1x128xf32>
    %c0_19 = arith.constant 0 : index
    %c0_20 = arith.constant 0 : index
    %27 = vector.load %arg9[%c0_19, %c0_20] : memref<1x128xf32, #tpu.memory_space<vmem>>, vector<1x128xf32>
    %cst_21 = arith.constant dense<0.000000e+00> : vector<8xf32>
    %28 = vector.multi_reduction <add>, %25, %cst_21 [1] : vector<8x128xf32> to vector<8xf32>
    %29 = vector.shape_cast %28 : vector<8xf32> to vector<8x1xf32>
    %cst_22 = arith.constant 1.562500e-02 : f32
    %30 = vector.broadcast %cst_22 : f32 to vector<8x1xf32>
    %31 = arith.mulf %29, %30 : vector<8x1xf32>
    %32 = arith.mulf %25, %25 : vector<8x128xf32>
    %cst_23 = arith.constant dense<0.000000e+00> : vector<8xf32>
    %33 = vector.multi_reduction <add>, %32, %cst_23 [1] : vector<8x128xf32> to vector<8xf32>
    %34 = vector.shape_cast %33 : vector<8xf32> to vector<8x1xf32>
    %cst_24 = arith.constant 1.562500e-02 : f32
    %35 = vector.broadcast %cst_24 : f32 to vector<8x1xf32>
    %36 = arith.mulf %34, %35 : vector<8x1xf32>
    %37 = arith.mulf %31, %31 : vector<8x1xf32>
    %38 = arith.subf %36, %37 : vector<8x1xf32>
    %cst_25 = arith.constant 9.99999974E-6 : f32
    %39 = vector.broadcast %cst_25 : f32 to vector<8x1xf32>
    %40 = arith.addf %38, %39 : vector<8x1xf32>
    %41 = math.rsqrt %40 : vector<8x1xf32>
    %42 = vector.broadcast %31 : vector<8x1xf32> to vector<8x128xf32>
    %43 = arith.subf %25, %42 : vector<8x128xf32>
    %44 = vector.broadcast %41 : vector<8x1xf32> to vector<8x128xf32>
    %45 = arith.mulf %43, %44 : vector<8x128xf32>
    %46 = vector.broadcast %26 : vector<1x128xf32> to vector<8x128xf32>
    %47 = arith.mulf %45, %46 : vector<8x128xf32>
    %48 = vector.broadcast %27 : vector<1x128xf32> to vector<8x128xf32>
    %49 = arith.addf %47, %48 : vector<8x128xf32>
    %50 = arith.negf %49 : vector<8x128xf32>
    %51 = math.exp %50 : vector<8x128xf32>
    %cst_26 = arith.constant 1.000000e+00 : f32
    %52 = vector.broadcast %cst_26 : f32 to vector<8x128xf32>
    %53 = arith.addf %52, %51 : vector<8x128xf32>
    %54 = arith.divf %52, %53 : vector<8x128xf32>
    %55 = arith.mulf %49, %54 : vector<8x128xf32>
    %c0_27 = arith.constant 0 : index
    %c0_28 = arith.constant 0 : index
    %56 = vector.load %arg10[%c0_27, %c0_28] : memref<128x128xf32, #tpu.memory_space<vmem>>, vector<128x128xf32>
    %cst_29 = arith.constant dense<0.000000e+00> : vector<8x128xf32>
    %57 = tpu.matmul %55, %56, %cst_29 {dimension_numbers = #tpu.dot_dimension_numbers<[1], [0], [0], [1], [0, 0, 1, 1], [], []>} : vector<8x128xf32>, vector<128x128xf32>, vector<8x128xf32> -> vector<8x128xf32>
    %c0_30 = arith.constant 0 : index
    %c0_31 = arith.constant 0 : index
    %58 = vector.load %arg11[%c0_30, %c0_31] : memref<1x128xf32, #tpu.memory_space<vmem>>, vector<1x128xf32>
    %59 = vector.broadcast %58 : vector<1x128xf32> to vector<8x128xf32>
    %60 = arith.addf %57, %59 : vector<8x128xf32>
    %c0_32 = arith.constant 0 : index
    %c0_33 = arith.constant 0 : index
    %61 = vector.load %arg12[%c0_32, %c0_33] : memref<1x128xf32, #tpu.memory_space<vmem>>, vector<1x128xf32>
    %c0_34 = arith.constant 0 : index
    %c0_35 = arith.constant 0 : index
    %62 = vector.load %arg13[%c0_34, %c0_35] : memref<1x128xf32, #tpu.memory_space<vmem>>, vector<1x128xf32>
    %cst_36 = arith.constant dense<0.000000e+00> : vector<8xf32>
    %63 = vector.multi_reduction <add>, %60, %cst_36 [1] : vector<8x128xf32> to vector<8xf32>
    %64 = vector.shape_cast %63 : vector<8xf32> to vector<8x1xf32>
    %cst_37 = arith.constant 1.562500e-02 : f32
    %65 = vector.broadcast %cst_37 : f32 to vector<8x1xf32>
    %66 = arith.mulf %64, %65 : vector<8x1xf32>
    %67 = arith.mulf %60, %60 : vector<8x128xf32>
    %cst_38 = arith.constant dense<0.000000e+00> : vector<8xf32>
    %68 = vector.multi_reduction <add>, %67, %cst_38 [1] : vector<8x128xf32> to vector<8xf32>
    %69 = vector.shape_cast %68 : vector<8xf32> to vector<8x1xf32>
    %cst_39 = arith.constant 1.562500e-02 : f32
    %70 = vector.broadcast %cst_39 : f32 to vector<8x1xf32>
    %71 = arith.mulf %69, %70 : vector<8x1xf32>
    %72 = arith.mulf %66, %66 : vector<8x1xf32>
    %73 = arith.subf %71, %72 : vector<8x1xf32>
    %cst_40 = arith.constant 9.99999974E-6 : f32
    %74 = vector.broadcast %cst_40 : f32 to vector<8x1xf32>
    %75 = arith.addf %73, %74 : vector<8x1xf32>
    %76 = math.rsqrt %75 : vector<8x1xf32>
    %77 = vector.broadcast %66 : vector<8x1xf32> to vector<8x128xf32>
    %78 = arith.subf %60, %77 : vector<8x128xf32>
    %79 = vector.broadcast %76 : vector<8x1xf32> to vector<8x128xf32>
    %80 = arith.mulf %78, %79 : vector<8x128xf32>
    %81 = vector.broadcast %61 : vector<1x128xf32> to vector<8x128xf32>
    %82 = arith.mulf %80, %81 : vector<8x128xf32>
    %83 = vector.broadcast %62 : vector<1x128xf32> to vector<8x128xf32>
    %84 = arith.addf %82, %83 : vector<8x128xf32>
    %85 = arith.negf %84 : vector<8x128xf32>
    %86 = math.exp %85 : vector<8x128xf32>
    %cst_41 = arith.constant 1.000000e+00 : f32
    %87 = vector.broadcast %cst_41 : f32 to vector<8x128xf32>
    %88 = arith.addf %87, %86 : vector<8x128xf32>
    %89 = arith.divf %87, %88 : vector<8x128xf32>
    %90 = arith.mulf %84, %89 : vector<8x128xf32>
    %c0_42 = arith.constant 0 : index
    %c0_43 = arith.constant 0 : index
    %91 = vector.load %arg14[%c0_42, %c0_43] : memref<128x128xf32, #tpu.memory_space<vmem>>, vector<128x128xf32>
    %cst_44 = arith.constant dense<0.000000e+00> : vector<8x128xf32>
    %92 = tpu.matmul %90, %91, %cst_44 {dimension_numbers = #tpu.dot_dimension_numbers<[1], [0], [0], [1], [0, 0, 1, 1], [], []>} : vector<8x128xf32>, vector<128x128xf32>, vector<8x128xf32> -> vector<8x128xf32>
    %c0_45 = arith.constant 0 : index
    %c0_46 = arith.constant 0 : index
    %93 = vector.load %arg15[%c0_45, %c0_46] : memref<1x128xf32, #tpu.memory_space<vmem>>, vector<1x128xf32>
    %94 = vector.broadcast %93 : vector<1x128xf32> to vector<8x128xf32>
    %95 = arith.addf %92, %94 : vector<8x128xf32>
    %c0_47 = arith.constant 0 : index
    %c0_48 = arith.constant 0 : index
    %96 = vector.load %arg16[%c0_47, %c0_48] : memref<8x128xf32, #tpu.memory_space<vmem>>, vector<8x128xf32>
    tpu.vector_store %arg16[%c0_47, %c0_48], %95 {strides = array<i32>} : memref<8x128xf32, #tpu.memory_space<vmem>>, vector<8x128xf32>,
    return
  }
}

</mosaic_0001>

<llo_original>
// kernel: tpu_custom_call.1
$region0: #{tpu_custom_call.1}
  #allocation0 [shape = 'u32[]', space=smem, size = 0x4, offset = 0x4, fixed_abs, tag = 'smem constant byte address 0x4 - core index']
  #allocation1 [shape = 'u32[144,128]{1,0:T(1,128)}', space=vmem, size = 0x12000, scoped, tag = 'internal scratch']
  %s0 = inlined_call_operand.vmem [shape: f32[8,128], index: 0, kind: input, shape index: {}]
  %s1 = inlined_call_operand.vmem [shape: f32[8,1], index: 1, kind: input, shape index: {}]
  %s2 = inlined_call_operand.vmem [shape: f32[1,128], index: 2, kind: input, shape index: {}]
  %s3 = inlined_call_operand.vmem [shape: f32[1,128], index: 3, kind: input, shape index: {}]
  %s4 = inlined_call_operand.hbm [shape: f32[128,128], index: 4, kind: input, shape index: {}]
  %s5 = inlined_call_operand.vmem [shape: f32[1,128], index: 5, kind: input, shape index: {}]
  %s6 = inlined_call_operand.hbm [shape: f32[128,128], index: 6, kind: input, shape index: {}]
  %s7 = inlined_call_operand.vmem [shape: f32[1,128], index: 7, kind: input, shape index: {}]
  %s8 = inlined_call_operand.vmem [shape: f32[1,128], index: 8, kind: input, shape index: {}]
  %s9 = inlined_call_operand.vmem [shape: f32[1,128], index: 9, kind: input, shape index: {}]
  %s10 = inlined_call_operand.hbm [shape: f32[128,128], index: 10, kind: input, shape index: {}]
  %s11 = inlined_call_operand.vmem [shape: f32[1,128], index: 11, kind: input, shape index: {}]
  %s12 = inlined_call_operand.vmem [shape: f32[1,128], index: 12, kind: input, shape index: {}]
  %s13 = inlined_call_operand.vmem [shape: f32[1,128], index: 13, kind: input, shape index: {}]
  %s14 = inlined_call_operand.hbm [shape: f32[128,128], index: 14, kind: input, shape index: {}]
  %s15 = inlined_call_operand.vmem [shape: f32[1,128], index: 15, kind: input, shape index: {}]
  %s16 = inlined_call_operand.hbm [shape: f32[8,128], index: 16, kind: output, shape index: {}]
  %s17 = sld [smem:[#allocation0]]
  $region90: #{tpu_custom_call.1} parent=0
    _
  %s19 = ssub.s32 1, %s17
  %s20 = scalar_select 0, %s19, %s17
  $region1: #{tpu_custom_call.1} parent=0
    #allocation2 [shape = 'u8[65536]{0}', space=vmem, size = 0x10000, scoped, tag = 'input window, operand 4, single buffered']
    #allocation3 [shape = 's32[1]{0}', space=sflag, size = 0x4, scoped, tag = 'scoped memory for tpu_custom_call.1']
    #allocation4 [shape = 's32[1]{0}', space=sflag, size = 0x4, scoped, tag = 'scoped memory for tpu_custom_call.1']
    #allocation5 [shape = 'u8[65536]{0}', space=vmem, size = 0x10000, scoped, tag = 'input window, operand 6, single buffered']
    #allocation6 [shape = 's32[1]{0}', space=sflag, size = 0x4, scoped, tag = 'scoped memory for tpu_custom_call.1']
    #allocation7 [shape = 'u8[65536]{0}', space=vmem, size = 0x10000, scoped, tag = 'input window, operand 10, single buffered']
    #allocation8 [shape = 'u8[65536]{0}', space=vmem, size = 0x10000, scoped, tag = 'input window, operand 14, single buffered']
    #allocation9 [shape = 's32[1]{0}', space=sflag, size = 0x4, scoped, tag = 'scoped memory for tpu_custom_call.1']
    #allocation10 [shape = 'u8[4096]{0}', space=vmem, size = 0x1000, scoped, tag = 'output window, operand 0, single buffered']
    %21 = vsyncpa [#allocation3], 0
    %22 = vsyncpa [#allocation6], 0
    %23 = vsyncpa [#allocation9], 0
    %24 = vsyncpa [#allocation4], 0
    // Predicated region
    $region2: #{tpu_custom_call.1} parent=1 // pred_check
      _
    $region3: #{tpu_custom_call.1} parent=1 // pred_check_branch
      %26 = sbr.rel (0) target = $region5
    $region4: #{tpu_custom_call.1} parent=1 // pred_region
      _
    $region5: #{tpu_custom_call.1} parent=1 // pred_fallthru
      _
    // Predicated region
    $region6: #{tpu_custom_call.1} parent=1 // pred_check
      _
    $region7: #{tpu_custom_call.1} parent=1 // pred_check_branch
      %28 = sbr.rel (0) target = $region9
    $region8: #{tpu_custom_call.1} parent=1 // pred_region
      _
    $region9: #{tpu_custom_call.1} parent=1 // pred_fallthru
      _
    // Predicated region
    $region10: #{tpu_custom_call.1} parent=1 // pred_check
      _
    $region11: #{tpu_custom_call.1} parent=1 // pred_check_branch
      %30 = sbr.rel (0) target = $region13
    $region12: #{tpu_custom_call.1} parent=1 // pred_region
      _
    $region13: #{tpu_custom_call.1} parent=1 // pred_fallthru
      _
    // Predicated region
    $region14: #{tpu_custom_call.1} parent=1 // pred_check
      _
    $region15: #{tpu_custom_call.1} parent=1 // pred_check_branch
      %32 = sbr.rel (0) target = $region17
    $region16: #{tpu_custom_call.1} parent=1 // pred_region
      _
    $region17: #{tpu_custom_call.1} parent=1 // pred_fallthru
      _
    // Predicated region
    $region18: #{tpu_custom_call.1} parent=1 // pred_check
      _
    $region19: #{tpu_custom_call.1} parent=1 // pred_check_branch
      %34 = sbr.rel (0) target = $region21
    $region20: #{tpu_custom_call.1} parent=1 // pred_region
      %s36 = ssub.s32 2048, 2048
      %37 = vsyncadd [#allocation3], %s36
      %s38 = sshll.u32 [#allocation2], 4
      %s39 = int_to_ptr.vmem [resolvable:$true] %s38
      %44 = dma.hbm_to_vmem [thread:$0]  %s4, 2048, %s39, [#allocation3], 128, 128, 8
    $region21: #{tpu_custom_call.1} parent=1 // pred_fallthru
      _
    // Predicated region
    $region22: #{tpu_custom_call.1} parent=1 // pred_check
      _
    $region23: #{tpu_custom_call.1} parent=1 // pred_check_branch
      %46 = sbr.rel (0) target = $region25
    $region24: #{tpu_custom_call.1} parent=1 // pred_region
      _
    $region25: #{tpu_custom_call.1} parent=1 // pred_fallthru
      _
    // Predicated region
    $region26: #{tpu_custom_call.1} parent=1 // pred_check
      _
    $region27: #{tpu_custom_call.1} parent=1 // pred_check_branch
      %48 = sbr.rel (0) target = $region29
    $region28: #{tpu_custom_call.1} parent=1 // pred_region
      %s50 = ssub.s32 2048, 2048
      %51 = vsyncadd [#allocation6], %s50
      %s52 = sshll.u32 [#allocation5], 4
      %s53 = int_to_ptr.vmem [resolvable:$true] %s52
      %58 = dma.hbm_to_vmem [thread:$0]  %s6, 2048, %s53, [#allocation6], 128, 128, 8
    $region29: #{tpu_custom_call.1} parent=1 // pred_fallthru
      _
    // Predicated region
    $region30: #{tpu_custom_call.1} parent=1 // pred_check
      _
    $region31: #{tpu_custom_call.1} parent=1 // pred_check_branch
      %60 = sbr.rel (0) target = $region33
    $region32: #{tpu_custom_call.1} parent=1 // pred_region
      _
    $region33: #{tpu_custom_call.1} parent=1 // pred_fallthru
      _
    // Predicated region
    $region34: #{tpu_custom_call.1} parent=1 // pred_check
      _
    $region35: #{tpu_custom_call.1} parent=1 // pred_check_branch
      %62 = sbr.rel (0) target = $region37
    $region36: #{tpu_custom_call.1} parent=1 // pred_region
      _
    $region37: #{tpu_custom_call.1} parent=1 // pred_fallthru
      _
    // Predicated region
    $region38: #{tpu_custom_call.1} parent=1 // pred_check
      _
    $region39: #{tpu_custom_call.1} parent=1 // pred_check_branch
      %64 = sbr.rel (0) target = $region41
    $region40: #{tpu_custom_call.1} parent=1 // pred_region
      _
    $region41: #{tpu_custom_call.1} parent=1 // pred_fallthru
      _
    // Predicated region
    $region42: #{tpu_custom_call.1} parent=1 // pred_check
      _
    $region43: #{tpu_custom_call.1} parent=1 // pred_check_branch
      %66 = sbr.rel (0) target = $region45
    $region44: #{tpu_custom_call.1} parent=1 // pred_region
      %s68 = ssub.s32 2048, 2048
      %69 = vsyncadd [#allocation6], %s68
      %s70 = sshll.u32 [#allocation7], 4
      %s71 = int_to_ptr.vmem [resolvable:$true] %s70
      %76 = dma.hbm_to_vmem [thread:$0]  %s10, 2048, %s71, [#allocation6], 128, 128, 8
    $region45: #{tpu_custom_call.1} parent=1 // pred_fallthru
      _
    // Predicated region
    $region46: #{tpu_custom_call.1} parent=1 // pred_check
      _
    $region47: #{tpu_custom_call.1} parent=1 // pred_check_branch
      %78 = sbr.rel (0) target = $region49
    $region48: #{tpu_custom_call.1} parent=1 // pred_region
      _
    $region49: #{tpu_custom_call.1} parent=1 // pred_fallthru
      _
    // Predicated region
    $region50: #{tpu_custom_call.1} parent=1 // pred_check
      _
    $region51: #{tpu_custom_call.1} parent=1 // pred_check_branch
      %80 = sbr.rel (0) target = $region53
    $region52: #{tpu_custom_call.1} parent=1 // pred_region
      _
    $region53: #{tpu_custom_call.1} parent=1 // pred_fallthru
      _
    // Predicated region
    $region54: #{tpu_custom_call.1} parent=1 // pred_check
      _
    $region55: #{tpu_custom_call.1} parent=1 // pred_check_branch
      %82 = sbr.rel (0) target = $region57
    $region56: #{tpu_custom_call.1} parent=1 // pred_region
      _
    $region57: #{tpu_custom_call.1} parent=1 // pred_fallthru
      _
    // Predicated region
    $region58: #{tpu_custom_call.1} parent=1 // pred_check
      _
    $region59: #{tpu_custom_call.1} parent=1 // pred_check_branch
      %84 = sbr.rel (0) target = $region61
    $region60: #{tpu_custom_call.1} parent=1 // pred_region
      %s86 = ssub.s32 2048, 2048
      %87 = vsyncadd [#allocation9], %s86
      %s88 = sshll.u32 [#allocation8], 4
      %s89 = int_to_ptr.vmem [resolvable:$true] %s88
      %94 = dma.hbm_to_vmem [thread:$0]  %s14, 2048, %s89, [#allocation9], 128, 128, 8
    $region61: #{tpu_custom_call.1} parent=1 // pred_fallthru
      _
    // Predicated region
    $region62: #{tpu_custom_call.1} parent=1 // pred_check
      _
    $region63: #{tpu_custom_call.1} parent=1 // pred_check_branch
      %96 = sbr.rel (0) target = $region65
    $region64: #{tpu_custom_call.1} parent=1 // pred_region
      _
    $region65: #{tpu_custom_call.1} parent=1 // pred_fallthru
      _
    // Predicated region
    $region66: #{tpu_custom_call.1} parent=1 // pred_check
      _
    $region67: #{tpu_custom_call.1} parent=1 // pred_check_branch
      %98 = sbr.rel (0) target = $region69
    $region68: #{tpu_custom_call.1} parent=1 // pred_region
      %99 = dma.done [#allocation3], 2048
    $region69: #{tpu_custom_call.1} parent=1 // pred_fallthru
      _
    // Predicated region
    $region70: #{tpu_custom_call.1} parent=1 // pred_check
      _
    $region71: #{tpu_custom_call.1} parent=1 // pred_check_branch
      %101 = sbr.rel (0) target = $region73
    $region72: #{tpu_custom_call.1} parent=1 // pred_region
      %102 = dma.done [#allocation6], 2048
    $region73: #{tpu_custom_call.1} parent=1 // pred_fallthru
      _
    // Predicated region
    $region74: #{tpu_custom_call.1} parent=1 // pred_check
      _
    $region75: #{tpu_custom_call.1} parent=1 // pred_check_branch
      %104 = sbr.rel (0) target = $region77
    $region76: #{tpu_custom_call.1} parent=1 // pred_region
      %105 = dma.done [#allocation6], 2048
    $region77: #{tpu_custom_call.1} parent=1 // pred_fallthru
      _
    // Predicated region
    $region78: #{tpu_custom_call.1} parent=1 // pred_check
      _
    $region79: #{tpu_custom_call.1} parent=1 // pred_check_branch
      %107 = sbr.rel (0) target = $region81
    $region80: #{tpu_custom_call.1} parent=1 // pred_region
      %108 = dma.done [#allocation9], 2048
    $region81: #{tpu_custom_call.1} parent=1 // pred_fallthru
      _
    %v109 = vld [vmem:[%s0] sm:$0xff]
    %v110 = vld [vmem:[%s1] sm:$0xff]
    %v111 = vld [vmem:[%s2] sm:$0x1]
    %113 = vset.pattern.permute.xlu0 0
    %114 = vperm.xlu0 %113, %v110
    %v115 = vpop.permute.xlu0 %114
    %v118 = vlaneseq
    %v119 = vshrl.u32 %v118, 7
    %v120 = vsub.s32 0, %v119
    %v121 = vrot.slane %v111, %v120
    %v123 = vmul.f32 %v115, %v121
    %v124 = vld [vmem:[%s3] sm:$0x1]
    %v126 = vlaneseq
    %v127 = vshrl.u32 %v126, 7
    %v128 = vsub.s32 0, %v127
    %v129 = vrot.slane %v124, %v128
    %v131 = vadd.f32 %v123, %v129
    %v132 = vxor.u32 %v131, 2147483648
    %v133 = vmul.f32 %v132, 1.442695
    %v134 = vpow.pop %v133
    %v135 = vadd.f32 %v134, 1.0
    %v136 = vrcp.pop %v135
    %v137 = vmul.f32 1.0, %v136
    %v138 = vmul.f32 %v131, %v137
    %v139 = vld [vmem:[#allocation2] sm:$0xff]
    %v140 = vld [vmem:[#allocation2 + $0x8] sm:$0xff]
    %v141 = vld [vmem:[#allocation2 + $0x10] sm:$0xff]
    %v142 = vld [vmem:[#allocation2 + $0x18] sm:$0xff]
    %v143 = vld [vmem:[#allocation2 + $0x20] sm:$0xff]
    %v144 = vld [vmem:[#allocation2 + $0x28] sm:$0xff]
    %v145 = vld [vmem:[#allocation2 + $0x30] sm:$0xff]
    %v146 = vld [vmem:[#allocation2 + $0x38] sm:$0xff]
    %v147 = vld [vmem:[#allocation2 + $0x40] sm:$0xff]
    %v148 = vld [vmem:[#allocation2 + $0x48] sm:$0xff]
    %v149 = vld [vmem:[#allocation2 + $0x50] sm:$0xff]
    %v150 = vld [vmem:[#allocation2 + $0x58] sm:$0xff]
    %v151 = vld [vmem:[#allocation2 + $0x60] sm:$0xff]
    %v152 = vld [vmem:[#allocation2 + $0x68] sm:$0xff]
    %v153 = vld [vmem:[#allocation2 + $0x70] sm:$0xff]
    %v154 = vld [vmem:[#allocation2 + $0x78] sm:$0xff]
    %v155 = vld [vmem:[%s5] sm:$0x1]
    %v157 = vlaneseq
    %v158 = vshrl.u32 %v157, 7
    %v159 = vsub.s32 0, %v158
    %v160 = vrot.slane %v155, %v159
    %162 = vmatprep.subr.mxu0 0.0
    %163 = vmatpush1.msra.mxu0 %v154
    %164 = vmatprep.subr.mxu0 0.0
    %165 = vmatpush1.msra.mxu0 %v153
    %166 = vmatprep.subr.mxu0 0.0
    %167 = vmatpush1.msra.mxu0 %v152
    %168 = vmatprep.subr.mxu0 0.0
    %169 = vmatpush1.msra.mxu0 %v151
    %170 = vmatprep.subr.mxu0 0.0
    %171 = vmatpush1.msra.mxu0 %v150
    %172 = vmatprep.subr.mxu0 0.0
    %173 = vmatpush1.msra.mxu0 %v149
    %174 = vmatprep.subr.mxu0 0.0
    %175 = vmatpush1.msra.mxu0 %v148
    %176 = vmatprep.subr.mxu0 0.0
    %177 = vmatpush1.msra.mxu0 %v147
    %178 = vmatprep.subr.mxu0 0.0
    %179 = vmatpush1.msra.mxu0 %v146
    %180 = vmatprep.subr.mxu0 0.0
    %181 = vmatpush1.msra.mxu0 %v145
    %182 = vmatprep.subr.mxu0 0.0
    %183 = vmatpush1.msra.mxu0 %v144
    %184 = vmatprep.subr.mxu0 0.0
    %185 = vmatpush1.msra.mxu0 %v143
    %186 = vmatprep.subr.mxu0 0.0
    %187 = vmatpush1.msra.mxu0 %v142
    %188 = vmatprep.subr.mxu0 0.0
    %189 = vmatpush1.msra.mxu0 %v141
    %190 = vmatprep.subr.mxu0 0.0
    %191 = vmatpush1.msra.mxu0 %v140
    %192 = vmatprep.subr.mxu0 0.0
    %193 = vmatpush1.msra.mxu0 %v139
    %194 = vmatprep.subr.mxu0 0.0
    %195 = vmatpush2.msra.mxu0 0.0
    %196 = vmatprep.subr.mxu0 0.0
    %197 = vmatpush2.msra.mxu0 0.0
    %198 = vmatprep.subr.mxu0 0.0
    %199 = vmatpush2.msra.mxu0 0.0
    %200 = vmatprep.subr.mxu0 0.0
    %201 = vmatpush2.msra.mxu0 0.0
    %202 = vmatprep.subr.mxu0 0.0
    %203 = vmatpush2.msra.mxu0 0.0
    %204 = vmatprep.subr.mxu0 0.0
    %205 = vmatpush2.msra.mxu0 0.0
    %206 = vmatprep.subr.mxu0 0.0
    %207 = vmatpush2.msra.mxu0 0.0
    %208 = vmatprep.subr.mxu0 0.0
    %209 = vmatpush2.msra.mxu0 0.0
    %210 = vmatprep.subr.mxu0 0.0
    %211 = vmatpush2.msra.mxu0 0.0
    %212 = vmatprep.subr.mxu0 0.0
    %213 = vmatpush2.msra.mxu0 0.0
    %214 = vmatprep.subr.mxu0 0.0
    %215 = vmatpush2.msra.mxu0 0.0
    %216 = vmatprep.subr.mxu0 0.0
    %217 = vmatpush2.msra.mxu0 0.0
    %218 = vmatprep.subr.mxu0 0.0
    %219 = vmatpush2.msra.mxu0 0.0
    %220 = vmatprep.subr.mxu0 0.0
    %221 = vmatpush2.msra.mxu0 0.0
    %222 = vmatprep.subr.mxu0 0.0
    %223 = vmatpush2.msra.mxu0 0.0
    %224 = vmatprep.subr.mxu0 0.0
    %225 = vmatpush2.msra.mxu0 0.0
    %226 = vmatprep.mubr.f32.mxu0 0.0
    %227 = vmatmul.mubr.f32.gmra.mxu0 %v138
    %v228 = vpop.f32.mrf.mxu0
    %v229 = vadd.f32 %v160, %v228
    %v230 = vpop.f32.mrf.mxu0
    %231 = vdwg.mxu0
    %v232 = vadd.f32 %v109, %v229
    %v233 = vld [vmem:[#allocation5] sm:$0xff]
    %v234 = vld [vmem:[#allocation5 + $0x8] sm:$0xff]
    %v235 = vld [vmem:[#allocation5 + $0x10] sm:$0xff]
    %v236 = vld [vmem:[#allocation5 + $0x18] sm:$0xff]
    %v237 = vld [vmem:[#allocation5 + $0x20] sm:$0xff]
    %v238 = vld [vmem:[#allocation5 + $0x28] sm:$0xff]
    %v239 = vld [vmem:[#allocation5 + $0x30] sm:$0xff]
    %v240 = vld [vmem:[#allocation5 + $0x38] sm:$0xff]
    %v241 = vld [vmem:[#allocation5 + $0x40] sm:$0xff]
    %v242 = vld [vmem:[#allocation5 + $0x48] sm:$0xff]
    %v243 = vld [vmem:[#allocation5 + $0x50] sm:$0xff]
    %v244 = vld [vmem:[#allocation5 + $0x58] sm:$0xff]
    %v245 = vld [vmem:[#allocation5 + $0x60] sm:$0xff]
    %v246 = vld [vmem:[#allocation5 + $0x68] sm:$0xff]
    %v247 = vld [vmem:[#allocation5 + $0x70] sm:$0xff]
    %v248 = vld [vmem:[#allocation5 + $0x78] sm:$0xff]
    %v249 = vld [vmem:[%s7] sm:$0x1]
    %v251 = vlaneseq
    %v252 = vshrl.u32 %v251, 7
    %v253 = vsub.s32 0, %v252
    %v254 = vrot.slane %v249, %v253
    %256 = vmatprep.subr.mxu0 0.0
    %257 = vmatpush1.msra.mxu0 %v248
    %258 = vmatprep.subr.mxu0 0.0
    %259 = vmatpush1.msra.mxu0 %v247
    %260 = vmatprep.subr.mxu0 0.0
    %261 = vmatpush1.msra.mxu0 %v246
    %262 = vmatprep.subr.mxu0 0.0
    %263 = vmatpush1.msra.mxu0 %v245
    %264 = vmatprep.subr.mxu0 0.0
    %265 = vmatpush1.msra.mxu0 %v244
    %266 = vmatprep.subr.mxu0 0.0
    %267 = vmatpush1.msra.mxu0 %v243
    %268 = vmatprep.subr.mxu0 0.0
    %269 = vmatpush1.msra.mxu0 %v242
    %270 = vmatprep.subr.mxu0 0.0
    %271 = vmatpush1.msra.mxu0 %v241
    %272 = vmatprep.subr.mxu0 0.0
    %273 = vmatpush1.msra.mxu0 %v240
    %274 = vmatprep.subr.mxu0 0.0
    %275 = vmatpush1.msra.mxu0 %v239
    %276 = vmatprep.subr.mxu0 0.0
    %277 = vmatpush1.msra.mxu0 %v238
    %278 = vmatprep.subr.mxu0 0.0
    %279 = vmatpush1.msra.mxu0 %v237
    %280 = vmatprep.subr.mxu0 0.0
    %281 = vmatpush1.msra.mxu0 %v236
    %282 = vmatprep.subr.mxu0 0.0
    %283 = vmatpush1.msra.mxu0 %v235
    %284 = vmatprep.subr.mxu0 0.0
    %285 = vmatpush1.msra.mxu0 %v234
    %286 = vmatprep.subr.mxu0 0.0
    %287 = vmatpush1.msra.mxu0 %v233
    %288 = vmatprep.subr.mxu0 0.0
    %289 = vmatpush2.msra.mxu0 0.0
    %290 = vmatprep.subr.mxu0 0.0
    %291 = vmatpush2.msra.mxu0 0.0
    %292 = vmatprep.subr.mxu0 0.0
    %293 = vmatpush2.msra.mxu0 0.0
    %294 = vmatprep.subr.mxu0 0.0
    %295 = vmatpush2.msra.mxu0 0.0
    %296 = vmatprep.subr.mxu0 0.0
    %297 = vmatpush2.msra.mxu0 0.0
    %298 = vmatprep.subr.mxu0 0.0
    %299 = vmatpush2.msra.mxu0 0.0
    %300 = vmatprep.subr.mxu0 0.0
    %301 = vmatpush2.msra.mxu0 0.0
    %302 = vmatprep.subr.mxu0 0.0
    %303 = vmatpush2.msra.mxu0 0.0
    %304 = vmatprep.subr.mxu0 0.0
    %305 = vmatpush2.msra.mxu0 0.0
    %306 = vmatprep.subr.mxu0 0.0
    %307 = vmatpush2.msra.mxu0 0.0
    %308 = vmatprep.subr.mxu0 0.0
    %309 = vmatpush2.msra.mxu0 0.0
    %310 = vmatprep.subr.mxu0 0.0
    %311 = vmatpush2.msra.mxu0 0.0
    %312 = vmatprep.subr.mxu0 0.0
    %313 = vmatpush2.msra.mxu0 0.0
    %314 = vmatprep.subr.mxu0 0.0
    %315 = vmatpush2.msra.mxu0 0.0
    %316 = vmatprep.subr.mxu0 0.0
    %317 = vmatpush2.msra.mxu0 0.0
    %318 = vmatprep.subr.mxu0 0.0
    %319 = vmatpush2.msra.mxu0 0.0
    %320 = vmatprep.mubr.f32.mxu0 0.0
    %321 = vmatmul.mubr.f32.gmra.mxu0 %v232
    %v322 = vpop.f32.mrf.mxu0
    %v323 = vadd.f32 %v254, %v322
    %v324 = vpop.f32.mrf.mxu0
    %325 = vdwg.mxu0
    %v326 = vld [vmem:[%s8] sm:$0x1]
    %v327 = vld [vmem:[%s9] sm:$0x1]
    %328 = vadd.xlane.f32.xlu0 %v323
    %v329 = vpop.xlane.xlu0 %328
    %v330 = vmul.f32 %v329, 0.015625
    %v331 = vmul.f32 %v323, %v323
    %332 = vadd.xlane.f32.xlu0 %v331
    %v333 = vpop.xlane.xlu0 %332
    %v334 = vmul.f32 %v333, 0.015625
    %v335 = vmul.f32 %v330, %v330
    %v336 = vsub.f32 %v334, %v335
    %v337 = vadd.f32 %v336, 1e-05
    %v338 = vrsqrt.pop %v337
    %v339 = vsub.f32 %v323, %v330
    %v340 = vmul.f32 %v339, %v338
    %v342 = vlaneseq
    %v343 = vshrl.u32 %v342, 7
    %v344 = vsub.s32 0, %v343
    %v345 = vrot.slane %v326, %v344
    %v347 = vmul.f32 %v340, %v345
    %v349 = vlaneseq
    %v350 = vshrl.u32 %v349, 7
    %v351 = vsub.s32 0, %v350
    %v352 = vrot.slane %v327, %v351
    %v354 = vadd.f32 %v347, %v352
    %v355 = vxor.u32 %v354, 2147483648
    %v356 = vmul.f32 %v355, 1.442695
    %v357 = vpow.pop %v356
    %v358 = vadd.f32 %v357, 1.0
    %v359 = vrcp.pop %v358
    %v360 = vmul.f32 1.0, %v359
    %v361 = vmul.f32 %v354, %v360
    %v362 = vld [vmem:[#allocation7] sm:$0xff]
    %v363 = vld [vmem:[#allocation7 + $0x8] sm:$0xff]
    %v364 = vld [vmem:[#allocation7 + $0x10] sm:$0xff]
    %v365 = vld [vmem:[#allocation7 + $0x18] sm:$0xff]
    %v366 = vld [vmem:[#allocation7 + $0x20] sm:$0xff]
    %v367 = vld [vmem:[#allocation7 + $0x28] sm:$0xff]
    %v368 = vld [vmem:[#allocation7 + $0x30] sm:$0xff]
    %v369 = vld [vmem:[#allocation7 + $0x38] sm:$0xff]
    %v370 = vld [vmem:[#allocation7 + $0x40] sm:$0xff]
    %v371 = vld [vmem:[#allocation7 + $0x48] sm:$0xff]
    %v372 = vld [vmem:[#allocation7 + $0x50] sm:$0xff]
    %v373 = vld [vmem:[#allocation7 + $0x58] sm:$0xff]
    %v374 = vld [vmem:[#allocation7 + $0x60] sm:$0xff]
    %v375 = vld [vmem:[#allocation7 + $0x68] sm:$0xff]
    %v376 = vld [vmem:[#allocation7 + $0x70] sm:$0xff]
    %v377 = vld [vmem:[#allocation7 + $0x78] sm:$0xff]
    %v378 = vld [vmem:[%s11] sm:$0x1]
    %v380 = vlaneseq
    %v381 = vshrl.u32 %v380, 7
    %v382 = vsub.s32 0, %v381
    %v383 = vrot.slane %v378, %v382
    %385 = vmatprep.subr.mxu0 0.0
    %386 = vmatpush1.msra.mxu0 %v377
    %387 = vmatprep.subr.mxu0 0.0
    %388 = vmatpush1.msra.mxu0 %v376
    %389 = vmatprep.subr.mxu0 0.0
    %390 = vmatpush1.msra.mxu0 %v375
    %391 = vmatprep.subr.mxu0 0.0
    %392 = vmatpush1.msra.mxu0 %v374
    %393 = vmatprep.subr.mxu0 0.0
    %394 = vmatpush1.msra.mxu0 %v373
    %395 = vmatprep.subr.mxu0 0.0
    %396 = vmatpush1.msra.mxu0 %v372
    %397 = vmatprep.subr.mxu0 0.0
    %398 = vmatpush1.msra.mxu0 %v371
    %399 = vmatprep.subr.mxu0 0.0
    %400 = vmatpush1.msra.mxu0 %v370
    %401 = vmatprep.subr.mxu0 0.0
    %402 = vmatpush1.msra.mxu0 %v369
    %403 = vmatprep.subr.mxu0 0.0
    %404 = vmatpush1.msra.mxu0 %v368
    %405 = vmatprep.subr.mxu0 0.0
    %406 = vmatpush1.msra.mxu0 %v367
    %407 = vmatprep.subr.mxu0 0.0
    %408 = vmatpush1.msra.mxu0 %v366
    %409 = vmatprep.subr.mxu0 0.0
    %410 = vmatpush1.msra.mxu0 %v365
    %411 = vmatprep.subr.mxu0 0.0
    %412 = vmatpush1.msra.mxu0 %v364
    %413 = vmatprep.subr.mxu0 0.0
    %414 = vmatpush1.msra.mxu0 %v363
    %415 = vmatprep.subr.mxu0 0.0
    %416 = vmatpush1.msra.mxu0 %v362
    %417 = vmatprep.subr.mxu0 0.0
    %418 = vmatpush2.msra.mxu0 0.0
    %419 = vmatprep.subr.mxu0 0.0
    %420 = vmatpush2.msra.mxu0 0.0
    %421 = vmatprep.subr.mxu0 0.0
    %422 = vmatpush2.msra.mxu0 0.0
    %423 = vmatprep.subr.mxu0 0.0
    %424 = vmatpush2.msra.mxu0 0.0
    %425 = vmatprep.subr.mxu0 0.0
    %426 = vmatpush2.msra.mxu0 0.0
    %427 = vmatprep.subr.mxu0 0.0
    %428 = vmatpush2.msra.mxu0 0.0
    %429 = vmatprep.subr.mxu0 0.0
    %430 = vmatpush2.msra.mxu0 0.0
    %431 = vmatprep.subr.mxu0 0.0
    %432 = vmatpush2.msra.mxu0 0.0
    %433 = vmatprep.subr.mxu0 0.0
    %434 = vmatpush2.msra.mxu0 0.0
    %435 = vmatprep.subr.mxu0 0.0
    %436 = vmatpush2.msra.mxu0 0.0
    %437 = vmatprep.subr.mxu0 0.0
    %438 = vmatpush2.msra.mxu0 0.0
    %439 = vmatprep.subr.mxu0 0.0
    %440 = vmatpush2.msra.mxu0 0.0
    %441 = vmatprep.subr.mxu0 0.0
    %442 = vmatpush2.msra.mxu0 0.0
    %443 = vmatprep.subr.mxu0 0.0
    %444 = vmatpush2.msra.mxu0 0.0
    %445 = vmatprep.subr.mxu0 0.0
    %446 = vmatpush2.msra.mxu0 0.0
    %447 = vmatprep.subr.mxu0 0.0
    %448 = vmatpush2.msra.mxu0 0.0
    %449 = vmatprep.mubr.f32.mxu0 0.0
    %450 = vmatmul.mubr.f32.gmra.mxu0 %v361
    %v451 = vpop.f32.mrf.mxu0
    %v452 = vadd.f32 %v383, %v451
    %v453 = vpop.f32.mrf.mxu0
    %454 = vdwg.mxu0
    %v455 = vld [vmem:[%s12] sm:$0x1]
    %v456 = vld [vmem:[%s13] sm:$0x1]
    %457 = vadd.xlane.f32.xlu0 %v452
    %v458 = vpop.xlane.xlu0 %457
    %v459 = vmul.f32 %v458, 0.015625
    %v460 = vmul.f32 %v452, %v452
    %461 = vadd.xlane.f32.xlu0 %v460
    %v462 = vpop.xlane.xlu0 %461
    %v463 = vmul.f32 %v462, 0.015625
    %v464 = vmul.f32 %v459, %v459
    %v465 = vsub.f32 %v463, %v464
    %v466 = vadd.f32 %v465, 1e-05
    %v467 = vrsqrt.pop %v466
    %v468 = vsub.f32 %v452, %v459
    %v469 = vmul.f32 %v468, %v467
    %v471 = vlaneseq
    %v472 = vshrl.u32 %v471, 7
    %v473 = vsub.s32 0, %v472
    %v474 = vrot.slane %v455, %v473
    %v476 = vmul.f32 %v469, %v474
    %v478 = vlaneseq
    %v479 = vshrl.u32 %v478, 7
    %v480 = vsub.s32 0, %v479
    %v481 = vrot.slane %v456, %v480
    %v483 = vadd.f32 %v476, %v481
    %v484 = vxor.u32 %v483, 2147483648
    %v485 = vmul.f32 %v484, 1.442695
    %v486 = vpow.pop %v485
    %v487 = vadd.f32 %v486, 1.0
    %v488 = vrcp.pop %v487
    %v489 = vmul.f32 1.0, %v488
    %v490 = vmul.f32 %v483, %v489
    %v491 = vld [vmem:[#allocation8] sm:$0xff]
    %v492 = vld [vmem:[#allocation8 + $0x8] sm:$0xff]
    %v493 = vld [vmem:[#allocation8 + $0x10] sm:$0xff]
    %v494 = vld [vmem:[#allocation8 + $0x18] sm:$0xff]
    %v495 = vld [vmem:[#allocation8 + $0x20] sm:$0xff]
    %v496 = vld [vmem:[#allocation8 + $0x28] sm:$0xff]
    %v497 = vld [vmem:[#allocation8 + $0x30] sm:$0xff]
    %v498 = vld [vmem:[#allocation8 + $0x38] sm:$0xff]
    %v499 = vld [vmem:[#allocation8 + $0x40] sm:$0xff]
    %v500 = vld [vmem:[#allocation8 + $0x48] sm:$0xff]
    %v501 = vld [vmem:[#allocation8 + $0x50] sm:$0xff]
    %v502 = vld [vmem:[#allocation8 + $0x58] sm:$0xff]
    %v503 = vld [vmem:[#allocation8 + $0x60] sm:$0xff]
    %v504 = vld [vmem:[#allocation8 + $0x68] sm:$0xff]
    %v505 = vld [vmem:[#allocation8 + $0x70] sm:$0xff]
    %v506 = vld [vmem:[#allocation8 + $0x78] sm:$0xff]
    %v507 = vld [vmem:[%s15] sm:$0x1]
    %v509 = vlaneseq
    %v510 = vshrl.u32 %v509, 7
    %v511 = vsub.s32 0, %v510
    %v512 = vrot.slane %v507, %v511
    %514 = vmatprep.subr.mxu0 0.0
    %515 = vmatpush1.msra.mxu0 %v506
    %516 = vmatprep.subr.mxu0 0.0
    %517 = vmatpush1.msra.mxu0 %v505
    %518 = vmatprep.subr.mxu0 0.0
    %519 = vmatpush1.msra.mxu0 %v504
    %520 = vmatprep.subr.mxu0 0.0
    %521 = vmatpush1.msra.mxu0 %v503
    %522 = vmatprep.subr.mxu0 0.0
    %523 = vmatpush1.msra.mxu0 %v502
    %524 = vmatprep.subr.mxu0 0.0
    %525 = vmatpush1.msra.mxu0 %v501
    %526 = vmatprep.subr.mxu0 0.0
    %527 = vmatpush1.msra.mxu0 %v500
    %528 = vmatprep.subr.mxu0 0.0
    %529 = vmatpush1.msra.mxu0 %v499
    %530 = vmatprep.subr.mxu0 0.0
    %531 = vmatpush1.msra.mxu0 %v498
    %532 = vmatprep.subr.mxu0 0.0
    %533 = vmatpush1.msra.mxu0 %v497
    %534 = vmatprep.subr.mxu0 0.0
    %535 = vmatpush1.msra.mxu0 %v496
    %536 = vmatprep.subr.mxu0 0.0
    %537 = vmatpush1.msra.mxu0 %v495
    %538 = vmatprep.subr.mxu0 0.0
    %539 = vmatpush1.msra.mxu0 %v494
    %540 = vmatprep.subr.mxu0 0.0
    %541 = vmatpush1.msra.mxu0 %v493
    %542 = vmatprep.subr.mxu0 0.0
    %543 = vmatpush1.msra.mxu0 %v492
    %544 = vmatprep.subr.mxu0 0.0
    %545 = vmatpush1.msra.mxu0 %v491
    %546 = vmatprep.subr.mxu0 0.0
    %547 = vmatpush2.msra.mxu0 0.0
    %548 = vmatprep.subr.mxu0 0.0
    %549 = vmatpush2.msra.mxu0 0.0
    %550 = vmatprep.subr.mxu0 0.0
    %551 = vmatpush2.msra.mxu0 0.0
    %552 = vmatprep.subr.mxu0 0.0
    %553 = vmatpush2.msra.mxu0 0.0
    %554 = vmatprep.subr.mxu0 0.0
    %555 = vmatpush2.msra.mxu0 0.0
    %556 = vmatprep.subr.mxu0 0.0
    %557 = vmatpush2.msra.mxu0 0.0
    %558 = vmatprep.subr.mxu0 0.0
    %559 = vmatpush2.msra.mxu0 0.0
    %560 = vmatprep.subr.mxu0 0.0
    %561 = vmatpush2.msra.mxu0 0.0
    %562 = vmatprep.subr.mxu0 0.0
    %563 = vmatpush2.msra.mxu0 0.0
    %564 = vmatprep.subr.mxu0 0.0
    %565 = vmatpush2.msra.mxu0 0.0
    %566 = vmatprep.subr.mxu0 0.0
    %567 = vmatpush2.msra.mxu0 0.0
    %568 = vmatprep.subr.mxu0 0.0
    %569 = vmatpush2.msra.mxu0 0.0
    %570 = vmatprep.subr.mxu0 0.0
    %571 = vmatpush2.msra.mxu0 0.0
    %572 = vmatprep.subr.mxu0 0.0
    %573 = vmatpush2.msra.mxu0 0.0
    %574 = vmatprep.subr.mxu0 0.0
    %575 = vmatpush2.msra.mxu0 0.0
    %576 = vmatprep.subr.mxu0 0.0
    %577 = vmatpush2.msra.mxu0 0.0
    %578 = vmatprep.mubr.f32.mxu0 0.0
    %579 = vmatmul.mubr.f32.gmra.mxu0 %v490
    %v580 = vpop.f32.mrf.mxu0
    %v581 = vadd.f32 %v512, %v580
    %v582 = vpop.f32.mrf.mxu0
    %583 = vdwg.mxu0
    %584 = vst [vmem:[#allocation10] sm:$0xff] %v581
    // Predicated region
    $region82: #{tpu_custom_call.1} parent=1 // pred_check
      _
    $region83: #{tpu_custom_call.1} parent=1 // pred_check_branch
      %586 = sbr.rel (0) target = $region85
    $region84: #{tpu_custom_call.1} parent=1 // pred_region
      %s588 = ssub.s32 128, 128
      %589 = vsyncadd [#allocation4], %s588
      %s591 = sshll.u32 [#allocation10], 4
      %s592 = int_to_ptr.vmem [resolvable:$true] %s591
      %594 = dma.vmem_to_hbm [thread:$0]  %s592, 128, %s16, [#allocation4]
    $region85: #{tpu_custom_call.1} parent=1 // pred_fallthru
      _
    // Predicated region
    $region86: #{tpu_custom_call.1} parent=1 // pred_check
      _
    $region87: #{tpu_custom_call.1} parent=1 // pred_check_branch
      %596 = sbr.rel (0) target = $region89
    $region88: #{tpu_custom_call.1} parent=1 // pred_region
      %597 = dma.done [#allocation4], 128
    $region89: #{tpu_custom_call.1} parent=1 // pred_fallthru
      _
    %598 = vsyncpa [#allocation3], 1
    %599 = vsyncpa [#allocation6], 1
    %600 = vsyncpa [#allocation9], 1
    %601 = vsyncpa [#allocation4], 1

</llo_original>
